<compile_context>
chip_gen: v5e
topology: v5e:2x2
jax: 0.10.0
libtpu: 0.0.40
codegen_flags: <defaults>
</compile_context>

<pallas_src>
import functools
import math

import jax
import jax.numpy as jnp
from jax.experimental import pallas as pl
from jax.experimental.pallas import tpu as pltpu

_VMEM_LIMIT = 32 * 1024 * 1024  # fits the v7x (64 MiB physical) scoped budget


# ----------------------------------------------------------------------------
# Row-tiled linear (x @ W + b) kernel — K/Q/V (fused) and output projections.
# ----------------------------------------------------------------------------
def _linear_kernel(x_ref, w_ref, b_ref, o_ref):
    o_ref[...] = (
        jnp.dot(x_ref[...], w_ref[...], preferred_element_type=jnp.float32)
        + b_ref[...]
    ).astype(o_ref.dtype)


def _linear(x2d, w, b, *, block_rows=512):
    """x2d: [M, Din], w: [Din, Dout], b: [Dout] -> [M, Dout]."""
    M, Din = x2d.shape
    Dout = w.shape[1]
    bm = M if M <= block_rows else block_rows  # full-dim block for small M
    return pl.pallas_call(
        _linear_kernel,
        out_shape=jax.ShapeDtypeStruct((M, Dout), x2d.dtype),
        grid=(pl.cdiv(M, bm),),
        in_specs=[
            pl.BlockSpec((bm, Din), lambda i: (i, 0)),
            pl.BlockSpec((Din, Dout), lambda i: (0, 0)),  # weight VMEM-resident
            pl.BlockSpec((1, Dout), lambda i: (0, 0)),
        ],
        out_specs=pl.BlockSpec((bm, Dout), lambda i: (i, 0)),
        compiler_params=pltpu.CompilerParams(
            dimension_semantics=("parallel",),
            vmem_limit_bytes=_VMEM_LIMIT,
        ),
    )(x2d, w, b.reshape(1, Dout))


# ----------------------------------------------------------------------------
# Attention kernel: all heads of one batch element per grid step.
# scores -> softmax -> (diffused) context.
# ----------------------------------------------------------------------------
def _attn_kernel(q_ref, k_ref, v_ref, ctx_ref, attn_ref, *, diffuse, alpha):
    # Blocks are (1, H, L, d); index [0] -> (H, L, d).
    q = q_ref[0]  # already scaled by 1/sqrt(d_k) via the folded query weight
    k = k_ref[0]
    v = v_ref[0]

    # scores in float32 (torch: query_key.float()); batched contraction on the
    # MXU, no operand transpose.
    s = jnp.einsum("hqd,hkd->hqk", q, k, preferred_element_type=jnp.float32)
    # TODO(synk): mask / layer_cache / attn_type / step paths not implemented
    #             (only the eval-mode, mask=None forward path).
    s = s - jnp.max(s, axis=-1, keepdims=True)
    p = jnp.exp(s)
    denom = jnp.sum(p, axis=-1, keepdims=True)
    attn_f32 = p * pl.reciprocal(denom, approx=True)

    # torch: attn = softmax(scores).to(query.dtype); dropout identity in eval.
    attn = attn_f32.astype(q.dtype)
    attn_ref[0] = attn.astype(attn_ref.dtype)

    ctx = jnp.einsum("hqk,hkd->hqd", attn, v, preferred_element_type=jnp.float32)
    if diffuse != 0:
        v_f32 = v.astype(jnp.float32)
        c_diff = ctx
        for i in range(diffuse):
            ctx = (1.0 - alpha) * c_diff + alpha * v_f32
            if i + 1 < diffuse:  # the reference never reads the last matmul
                c_diff = jnp.einsum(
                    "hqk,hkd->hqd", attn, ctx.astype(q.dtype),
                    preferred_element_type=jnp.float32,
                )
    ctx_ref[0] = ctx.astype(ctx_ref.dtype)


def _attention(q, k, v, diffuse, alpha):
    """q: [B,H,Lq,dk], k: [B,H,Lk,dk], v: [B,H,Lk,dv]."""
    B, H, Lq, dk = q.shape
    Lk = k.shape[2]
    dv = v.shape[3]
    kernel = functools.partial(_attn_kernel, diffuse=int(diffuse), alpha=float(alpha))
    ctx, attn = pl.pallas_call(
        kernel,
        out_shape=(
            jax.ShapeDtypeStruct((B, H, Lq, dv), q.dtype),
            jax.ShapeDtypeStruct((B, H, Lq, Lk), q.dtype),  # attn in query dtype
        ),
        grid=(B,),
        in_specs=[
            pl.BlockSpec((1, H, Lq, dk), lambda b: (b, 0, 0, 0)),
            pl.BlockSpec((1, H, Lk, dk), lambda b: (b, 0, 0, 0)),
            pl.BlockSpec((1, H, Lk, dv), lambda b: (b, 0, 0, 0)),
        ],
        out_specs=(
            pl.BlockSpec((1, H, Lq, dv), lambda b: (b, 0, 0, 0)),
            pl.BlockSpec((1, H, Lq, Lk), lambda b: (b, 0, 0, 0)),
        ),
        compiler_params=pltpu.CompilerParams(
            dimension_semantics=("parallel",),
            vmem_limit_bytes=_VMEM_LIMIT,
        ),
    )(q, k, v)
    return ctx, attn


# ----------------------------------------------------------------------------
# Module wrapper
# ----------------------------------------------------------------------------
def init_params(rng, head_count, model_dim, d_k, d_v):
    """Deterministic init, torch.nn.Linear-style uniform(-1/sqrt(fan_in), +)."""
    ks = jax.random.split(rng, 8)

    def lin_init(kw, kb, fan_in, fan_out):
        bound = 1.0 / math.sqrt(fan_in)
        w = jax.random.uniform(kw, (fan_in, fan_out), jnp.float32, -bound, bound)
        b = jax.random.uniform(kb, (fan_out,), jnp.float32, -bound, bound)
        return w, b

    wk, bk = lin_init(ks[0], ks[1], model_dim, head_count * d_k)
    wq, bq = lin_init(ks[2], ks[3], model_dim, head_count * d_k)
    wv, bv = lin_init(ks[4], ks[5], model_dim, head_count * d_v)
    wo, bo = lin_init(ks[6], ks[7], head_count * d_v, model_dim)
    return dict(wk=wk, bk=bk, wq=wq, bq=bq, wv=wv, bv=bv, wo=wo, bo=bo)


def multi_headed_diffused_attention(
    params, key_x, value_x, query_x, *, head_count, d_k, d_v,
    diffuse=0, alpha=0.15, mask=None
):
    assert mask is None  # TODO(synk): masked_fill path not implemented
    B, Lk, model_dim = key_x.shape
    Lq = query_x.shape[1]
    H = head_count

    # Fold 1/sqrt(d_k) into the query projection: no separate pass over q.
    scale = 1.0 / math.sqrt(d_k)
    wq = params["wq"] * scale
    bq = params["bq"] * scale

    def shape_heads(y2d, b_, l_, dim):
        # shape(): [B*L, H*dim] -> [B, H, L, dim]
        return y2d.reshape(b_, l_, H, dim).transpose(0, 2, 1, 3)

    if (key_x is query_x) and (key_x is value_x):
        # self-attention: one fused K/Q/V matmul (input read from HBM once).
        w_f = jnp.concatenate([params["wk"], wq, params["wv"]], axis=1)
        b_f = jnp.concatenate([params["bk"], bq, params["bv"]], axis=0)
        kqv = _linear(key_x.reshape(-1, model_dim), w_f, b_f)
        k = shape_heads(kqv[:, : H * d_k], B, Lk, d_k)
        q = shape_heads(kqv[:, H * d_k: 2 * H * d_k], B, Lq, d_k)
        v = shape_heads(kqv[:, 2 * H * d_k:], B, Lk, d_v)
    elif key_x is value_x:
        # cross-attention over a shared memory bank: fuse K and V.
        w_kv = jnp.concatenate([params["wk"], params["wv"]], axis=1)
        b_kv = jnp.concatenate([params["bk"], params["bv"]], axis=0)
        kv = _linear(key_x.reshape(-1, model_dim), w_kv, b_kv)
        k = shape_heads(kv[:, : H * d_k], B, Lk, d_k)
        v = shape_heads(kv[:, H * d_k:], B, Lk, d_v)
        q = shape_heads(_linear(query_x.reshape(-1, model_dim), wq, bq), B, Lq, d_k)
    else:
        k = shape_heads(_linear(key_x.reshape(-1, model_dim),
                                params["wk"], params["bk"]), B, Lk, d_k)
        v = shape_heads(_linear(value_x.reshape(-1, model_dim),
                                params["wv"], params["bv"]), B, Lk, d_v)
        q = shape_heads(_linear(query_x.reshape(-1, model_dim), wq, bq), B, Lq, d_k)

    ctx, attn = _attention(q, k, v, diffuse, alpha)

    # unshape(): [B, H, Lq, d_v] -> [B*Lq, H*d_v]
    # TODO(synk): writing ctx lane-dense as [B, Lq, H*d_v] directly from the
    # kernel would remove this transpose, but needs d_v % 128 == 0 blocks.
    context = ctx.transpose(0, 2, 1, 3).reshape(B * Lq, H * d_v)
    final = _linear(context, params["wo"], params["bo"]).reshape(B, Lq, model_dim)

    attn_per_head = [attn[:, h] for h in range(H)]  # each [B, Lq, Lk]
    return final, attn_per_head


# ----------------------------------------------------------------------------
# Pure-JAX reference (mirrors the torch module, eval mode, mask=None)
# ----------------------------------------------------------------------------
def _reference(params, key_x, value_x, query_x, *, head_count, d_k, d_v,
               diffuse, alpha):
    B, Lk, D = key_x.shape
    Lq = query_x.shape[1]
    H = head_count

    def proj(x, w, b, dim):
        y = x.reshape(-1, D) @ w + b
        return y.reshape(x.shape[0], x.shape[1], H, dim).transpose(0, 2, 1, 3)

    k = proj(key_x, params["wk"], params["bk"], d_k)
    v = proj(value_x, params["wv"], params["bv"], d_v)
    q = proj(query_x, params["wq"], params["bq"], d_k) / math.sqrt(d_k)
    scores = jnp.einsum("bhqd,bhkd->bhqk", q, k).astype(jnp.float32)
    attn = jax.nn.softmax(scores, axis=-1).astype(q.dtype)
    ctx = jnp.einsum("bhqk,bhkd->bhqd", attn, v)
    if diffuse != 0:
        c_diff = ctx
        for _ in range(diffuse):
            ctx = (1.0 - alpha) * c_diff + alpha * v
            c_diff = jnp.einsum("bhqk,bhkd->bhqd", attn, ctx)
    context = ctx.transpose(0, 2, 1, 3).reshape(B, Lq, H * d_v)
    out = (context.reshape(-1, H * d_v) @ params["wo"] + params["bo"]).reshape(
        B, Lq, D)
    return out, attn


if __name__ == "__main__":
    B, L, model_dim = 2, 8, 32
    head_count, d_k, d_v = 4, 8, 8
    diffuse, alpha = 2, 0.15

    rng = jax.random.PRNGKey(0)
    p_rng, kx, kq = jax.random.split(rng, 3)
    params = init_params(p_rng, head_count, model_dim, d_k, d_v)

    x = jax.random.normal(kx, (B, L, model_dim), jnp.float32)     # memory / self
    q_x = jax.random.normal(kq, (B, L, model_dim), jnp.float32)   # cross query

    # --- self-attention (fused K/Q/V projection path) ---
    out, attn_per_head = multi_headed_diffused_attention(
        params, x, x, x, head_count=head_count, d_k=d_k, d_v=d_v,
        diffuse=diffuse, alpha=alpha)
    out = jax.block_until_ready(out)
    attn_full = jnp.stack([jax.block_until_ready(a) for a in attn_per_head], axis=1)

    ref_out, ref_attn = _reference(params, x, x, x, head_count=head_count,
                                   d_k=d_k, d_v=d_v, diffuse=diffuse, alpha=alpha)
    assert out.shape == (B, L, model_dim)
    assert len(attn_per_head) == head_count
    assert attn_per_head[0].shape == (B, L, L)
    assert jnp.allclose(out, ref_out, atol=5e-2, rtol=5e-2)
    assert jnp.allclose(attn_full, ref_attn, atol=5e-3, rtol=5e-3)

    # --- cross-attention (key is value memory bank, separate query) ---
    out2, _ = multi_headed_diffused_attention(
        params, x, x, q_x, head_count=head_count, d_k=d_k, d_v=d_v,
        diffuse=diffuse, alpha=alpha)
    out2 = jax.block_until_ready(out2)
    ref_out2, _ = _reference(params, x, x, q_x, head_count=head_count,
                             d_k=d_k, d_v=d_v, diffuse=diffuse, alpha=alpha)
    assert jnp.allclose(out2, ref_out2, atol=5e-2, rtol=5e-2)

    print("KERNEL_OK")
</pallas_src>

<mosaic_0001>
module attributes {stable_mosaic.version = 11 : i64} {
  func.func @_linear_kernel(%arg0: i32, %arg1: memref<16x32xf32, #tpu.memory_space<vmem>>, %arg2: memref<32x96xf32, #tpu.memory_space<vmem>>, %arg3: memref<1x96xf32, #tpu.memory_space<vmem>>, %arg4: memref<16x96xf32, #tpu.memory_space<vmem>>) attributes {dimension_semantics = [#tpu.dimension_semantics<parallel>], iteration_bounds = array<i64: 1>, scalar_prefetch = 0 : i64, scratch_operands = 0 : i64, tpu.core_type = #tpu.core_type<tc>, window_params = [{transform_indices = @transform_0, window_bounds = array<i64: 16, 32>}, {pipeline_mode = #tpu.pipeline_mode<synchronous>, transform_indices = @transform_1, window_bounds = array<i64: 32, 96>}, {pipeline_mode = #tpu.pipeline_mode<synchronous>, transform_indices = @transform_2, window_bounds = array<i64: 1, 96>}, {transform_indices = @transform_3, window_bounds = array<i64: 16, 96>}]} {
    %c0 = arith.constant 0 : index
    %c0_0 = arith.constant 0 : index
    %0 = vector.load %arg1[%c0, %c0_0] : memref<16x32xf32, #tpu.memory_space<vmem>>, vector<16x32xf32>
    %c0_1 = arith.constant 0 : index
    %c0_2 = arith.constant 0 : index
    %1 = vector.load %arg2[%c0_1, %c0_2] : memref<32x96xf32, #tpu.memory_space<vmem>>, vector<32x96xf32>
    %cst = arith.constant dense<0.000000e+00> : vector<16x96xf32>
    %2 = tpu.matmul %0, %1, %cst {dimension_numbers = #tpu.dot_dimension_numbers<[1], [0], [0], [1], [0, 0, 1, 1], [], []>} : vector<16x32xf32>, vector<32x96xf32>, vector<16x96xf32> -> vector<16x96xf32>
    %c0_3 = arith.constant 0 : index
    %c0_4 = arith.constant 0 : index
    %3 = vector.load %arg3[%c0_3, %c0_4] : memref<1x96xf32, #tpu.memory_space<vmem>>, vector<1x96xf32>
    %4 = vector.broadcast %3 : vector<1x96xf32> to vector<16x96xf32>
    %5 = arith.addf %2, %4 : vector<16x96xf32>
    %c0_5 = arith.constant 0 : index
    %c0_6 = arith.constant 0 : index
    %6 = vector.load %arg4[%c0_5, %c0_6] : memref<16x96xf32, #tpu.memory_space<vmem>>, vector<16x96xf32>
    tpu.vector_store %arg4[%c0_5, %c0_6], %5 {strides = array<i32>} : memref<16x96xf32, #tpu.memory_space<vmem>>, vector<16x96xf32>,
    return
  }
  func.func @transform_0(%arg0: i32) -> (i32, i32) {
    %c0_i32 = arith.constant 0 : i32
    %c0_i32_0 = arith.constant 0 : i32
    return %arg0, %c0_i32 : i32, i32
  }
  func.func @transform_1(%arg0: i32) -> (i32, i32) {
    %c0_i32 = arith.constant 0 : i32
    %c0_i32_0 = arith.constant 0 : i32
    %c0_i32_1 = arith.constant 0 : i32
    return %c0_i32, %c0_i32_0 : i32, i32
  }
  func.func @transform_2(%arg0: i32) -> (i32, i32) {
    %c0_i32 = arith.constant 0 : i32
    %c0_i32_0 = arith.constant 0 : i32
    %c0_i32_1 = arith.constant 0 : i32
    return %c0_i32, %c0_i32_0 : i32, i32
  }
  func.func @transform_3(%arg0: i32) -> (i32, i32) {
    %c0_i32 = arith.constant 0 : i32
    %c0_i32_0 = arith.constant 0 : i32
    return %arg0, %c0_i32 : i32, i32
  }
}

</mosaic_0001>

<llo_original>
// kernel: tpu_custom_call.1
$region0: #{tpu_custom_call.1}
  #allocation0 [shape = 'u32[]', space=smem, size = 0x4, offset = 0x4, fixed_abs, tag = 'smem constant byte address 0x4 - core index']
  #allocation1 [shape = 'u32[72,128]{1,0:T(1,128)}', space=vmem, size = 0x9000, scoped, tag = 'internal scratch']
  %s0 = inlined_call_operand.hbm [shape: f32[16,32], index: 0, kind: input, shape index: {}]
  %s1 = inlined_call_operand.hbm [shape: f32[32,96], index: 1, kind: input, shape index: {}]
  %s2 = inlined_call_operand.vmem [shape: f32[1,96], index: 2, kind: input, shape index: {}]
  %s3 = inlined_call_operand.hbm [shape: f32[16,96], index: 3, kind: output, shape index: {}]
  %s4 = sld [smem:[#allocation0]]
  $region30: #{tpu_custom_call.1} parent=0
    _
  %s6 = ssub.s32 1, %s4
  %s7 = scalar_select 0, %s6, %s4
  $region1: #{tpu_custom_call.1} parent=0
    #allocation2 [shape = 'u8[8192]{0}', space=vmem, size = 0x2000, scoped, tag = 'input window, operand 0, single buffered']
    #allocation3 [shape = 's32[1]{0}', space=sflag, size = 0x4, scoped, tag = 'scoped memory for tpu_custom_call.1']
    #allocation4 [shape = 's32[1]{0}', space=sflag, size = 0x4, scoped, tag = 'scoped memory for tpu_custom_call.1']
    #allocation5 [shape = 'u8[16384]{0}', space=vmem, size = 0x4000, scoped, tag = 'input window, operand 1, single buffered']
    #allocation6 [shape = 's32[1]{0}', space=sflag, size = 0x4, scoped, tag = 'scoped memory for tpu_custom_call.1']
    #allocation7 [shape = 'u8[8192]{0}', space=vmem, size = 0x2000, scoped, tag = 'output window, operand 0, single buffered']
    %8 = vsyncpa [#allocation3], 0
    %9 = vsyncpa [#allocation6], 0
    %10 = vsyncpa [#allocation4], 0
    // Predicated region
    $region2: #{tpu_custom_call.1} parent=1 // pred_check
      _
    $region3: #{tpu_custom_call.1} parent=1 // pred_check_branch
      %12 = sbr.rel (0) target = $region5
    $region4: #{tpu_custom_call.1} parent=1 // pred_region
      %14 = vsyncadd [#allocation3], 0
      %s15 = sshll.u32 %s0, 4
      %s16 = int_to_ptr.hbm [resolvable:$true] %s15
      %s17 = sshll.u32 [#allocation2], 4
      %s18 = int_to_ptr.vmem [resolvable:$true] %s17
      %23 = dma.hbm_to_vmem [thread:$0]  %s16, 256, %s18, [#allocation3], 128, 128, 8
    $region5: #{tpu_custom_call.1} parent=1 // pred_fallthru
      _
    // Predicated region
    $region6: #{tpu_custom_call.1} parent=1 // pred_check
      _
    $region7: #{tpu_custom_call.1} parent=1 // pred_check_branch
      %25 = sbr.rel (0) target = $region9
    $region8: #{tpu_custom_call.1} parent=1 // pred_region
      %27 = vsyncadd [#allocation6], 0
      %s28 = sshll.u32 %s1, 4
      %s29 = int_to_ptr.hbm [resolvable:$true] %s28
      %s30 = sshll.u32 [#allocation5], 4
      %s31 = int_to_ptr.vmem [resolvable:$true] %s30
      %36 = dma.hbm_to_vmem [thread:$0]  %s29, 512, %s31, [#allocation6], 128, 128, 8
    $region9: #{tpu_custom_call.1} parent=1 // pred_fallthru
      _
    // Predicated region
    $region10: #{tpu_custom_call.1} parent=1 // pred_check
      _
    $region11: #{tpu_custom_call.1} parent=1 // pred_check_branch
      %38 = sbr.rel (0) target = $region13
    $region12: #{tpu_custom_call.1} parent=1 // pred_region
      _
    $region13: #{tpu_custom_call.1} parent=1 // pred_fallthru
      _
    // Predicated region
    $region14: #{tpu_custom_call.1} parent=1 // pred_check
      _
    $region15: #{tpu_custom_call.1} parent=1 // pred_check_branch
      %40 = sbr.rel (0) target = $region17
    $region16: #{tpu_custom_call.1} parent=1 // pred_region
      %42 = dma.done [#allocation3], 256
    $region17: #{tpu_custom_call.1} parent=1 // pred_fallthru
      _
    // Predicated region
    $region18: #{tpu_custom_call.1} parent=1 // pred_check
      _
    $region19: #{tpu_custom_call.1} parent=1 // pred_check_branch
      %44 = sbr.rel (0) target = $region21
    $region20: #{tpu_custom_call.1} parent=1 // pred_region
      %46 = dma.done [#allocation6], 512
    $region21: #{tpu_custom_call.1} parent=1 // pred_fallthru
      _
    %v47 = vld [vmem:[#allocation2] sm:$0xff]
    %v48 = vld [vmem:[#allocation2 + $0x8] sm:$0xff]
    %v49 = vld [vmem:[#allocation5] sm:$0xff]
    %v50 = vld [vmem:[#allocation5 + $0x8] sm:$0xff]
    %v51 = vld [vmem:[#allocation5 + $0x10] sm:$0xff]
    %v52 = vld [vmem:[#allocation5 + $0x18] sm:$0xff]
    %v53 = vld [vmem:[%s2] sm:$0x1]
    %v55 = vperm.slane %v53, 0
    %vm57 = vcmask 261120
    %v59 = vsel %vm57, %v47, 0
    %v62 = vsel %vm57, %v48, 0
    %64 = vmatpush.msra.mxu0 0.0
    %65 = vmatpush.msra.mxu0 0.0
    %66 = vmatpush.msra.mxu0 0.0
    %67 = vmatpush.msra.mxu0 0.0
    %68 = vmatpush.msra.mxu0 0.0
    %69 = vmatpush.msra.mxu0 0.0
    %70 = vmatpush.msra.mxu0 0.0
    %71 = vmatpush.msra.mxu0 0.0
    %72 = vmatpush.msra.mxu0 0.0
    %73 = vmatpush.msra.mxu0 0.0
    %74 = vmatpush.msra.mxu0 0.0
    %75 = vmatpush.msra.mxu0 0.0
    %76 = vmatpush.msra.mxu0 %v52
    %77 = vmatpush.msra.mxu0 %v51
    %78 = vmatpush.msra.mxu0 %v50
    %79 = vmatpush.msra.mxu0 %v49
    %80 = vmatmul.f32.gmra.mxu0 %v59
    %v81 = vpop.f32.mrf.mxu0
    %v82 = vadd.f32 %v55, %v81
    %83 = vmatmul.f32.gmra.mxu0 %v62
    %v84 = vpop.f32.mrf.mxu0
    %v85 = vadd.f32 %v55, %v84
    %86 = vdwg.mxu0
    %vm87 = vcmask 785408
    %88 = vst.msk [vmem:[#allocation7] sm:$0xff] %vm87, %v82
    %89 = vst.msk [vmem:[#allocation7 + $0x8] sm:$0xff] %vm87, %v85
    // Predicated region
    $region22: #{tpu_custom_call.1} parent=1 // pred_check
      _
    $region23: #{tpu_custom_call.1} parent=1 // pred_check_branch
      %91 = sbr.rel (0) target = $region25
    $region24: #{tpu_custom_call.1} parent=1 // pred_region
      %93 = vsyncadd [#allocation4], 0
      %s94 = sshll.u32 [#allocation7], 4
      %s95 = int_to_ptr.vmem [resolvable:$true] %s94
      %s96 = sshll.u32 %s3, 4
      %s97 = int_to_ptr.hbm [resolvable:$true] %s96
      %102 = dma.vmem_to_hbm [thread:$0]  %s95, 256, %s97, [#allocation4], 128, 128, 8
    $region25: #{tpu_custom_call.1} parent=1 // pred_fallthru
      _
    // Predicated region
    $region26: #{tpu_custom_call.1} parent=1 // pred_check
      _
    $region27: #{tpu_custom_call.1} parent=1 // pred_check_branch
      %104 = sbr.rel (0) target = $region29
    $region28: #{tpu_custom_call.1} parent=1 // pred_region
      %106 = dma.done [#allocation4], 256
    $region29: #{tpu_custom_call.1} parent=1 // pred_fallthru
      _
    %107 = vsyncpa [#allocation3], 1
    %108 = vsyncpa [#allocation6], 1
    %109 = vsyncpa [#allocation4], 1

</llo_original>
